<compile_context>
chip_gen: v6e
topology: v6e:2x2x1
jax: 0.10.0
libtpu: 0.0.40
codegen_flags: <defaults>
</compile_context>

<pallas_src>
import jax
import jax.numpy as jnp
from jax.experimental import pallas as pl
from jax.experimental.pallas import tpu as pltpu


def _round_up(x: int, m: int) -> int:
    return ((x + m - 1) // m) * m


def _icnn_kernel(z_ref, x_ref, w_skip_t_ref, b_skip_ref, w_pos_t_ref, o_ref):
    """One (batch-tile, feature-tile) block of the ICNN layer.

    z_ref:        (TB, Din)     input to the positively-constrained path
    x_ref:        (TB, Dout)    input to the skip path
    w_skip_t_ref: (Dout, TN)    pre-transposed skip weight (bf16)
    b_skip_ref:   (1, TN)       skip bias (f32)
    w_pos_t_ref:  (Din, TN)     pre-transposed exp(logW) (bf16)
    o_ref:        (TB, TN)      output tile (f32)
    """
    cdt = w_skip_t_ref.dtype  # MXU compute dtype (bf16 by default)

    # skip path: x @ W_skip^T   (transpose hoisted to the wrapper)
    acc = jnp.dot(
        x_ref[...].astype(cdt), w_skip_t_ref[...],
        preferred_element_type=jnp.float32,
    )
    # positive path: z @ exp(logW)^T   (exp + transpose hoisted to the wrapper)
    acc += jnp.dot(
        z_ref[...].astype(cdt), w_pos_t_ref[...],
        preferred_element_type=jnp.float32,
    )
    # f32 bias add, single store per tile (one consumer of the vst slot).
    o_ref[...] = (acc + b_skip_ref[...]).astype(o_ref.dtype)


def input_convex_layer(z, x, w_skip, b_skip, log_weights, *,
                       tb: int = 512, compute_dtype=jnp.bfloat16):
    """Pallas wrapper. z:(B,Din), x:(B,Dout) -> (B, Dout) in float32.

    z / x may already be in `compute_dtype` (bf16); the in-kernel cast then
    no-ops, halving input HBM read traffic for this memory-bound kernel.
    """
    B, din = z.shape
    bx, dout = x.shape
    assert bx == B
    assert w_skip.shape == (din, dout)          # nn.Linear(out=din, in=dout) weight
    assert b_skip.shape == (din,)
    assert log_weights.shape == (dout, din)     # PositiveLinear(in=din, out=dout)
    assert din == dout, "InputConvexLayer requires input_dimension == output_dimension"
    d = dout

    # ---- one-time weight preprocessing (hoisted out of the steady-state loop) ----
    w_skip_t = w_skip.T.astype(compute_dtype)                                   # (dout, din)
    w_pos_t = jnp.exp(log_weights.astype(jnp.float32)).T.astype(compute_dtype)  # (din, dout)
    b2 = b_skip.astype(jnp.float32).reshape(1, d)

    # ---- batch (M) tiling: target 4-8 grid steps; tiles capped at `tb` rows,
    # floored at 256 rows (512-row tiles already reach ~85% of HBM roofline). ----
    tb_cap = max(8, _round_up(min(tb, 512), 8))
    if B <= tb_cap:
        tb_eff = B              # single tile; block dim == full array dim -> always legal
    else:
        tb_eff = tb_cap
        target_steps = 4        # >= 2 steps per core even on 2-TC (v7x) chips
        if pl.cdiv(B, tb_eff) < target_steps and B >= target_steps * 256:
            tb_eff = max(256, _round_up(pl.cdiv(B, target_steps), 8))
    grid_b = pl.cdiv(B, tb_eff)

    # ---- output-feature (N) tiling only for very large d (v7x VMEM guard). ----
    if d >= 2048 and d % 128 == 0:
        tn = 512 if d % 512 == 0 else (256 if d % 256 == 0 else 128)
    else:
        tn = d                  # block dim == full array dim -> (8,128) rule satisfied
    grid_n = pl.cdiv(d, tn)

    # ---- resident weights: drop to single buffering when their double-buffered
    # footprint is large (only relevant for the generic big-d case; never at d=32). ----
    w_item = jnp.dtype(compute_dtype).itemsize
    weight_kwargs = {}
    if grid_n == 1 and 2 * (2 * d * tn * w_item) > (4 << 20):
        weight_kwargs = dict(pipeline_mode=pl.Buffered(1))

    # ---- VMEM budget from actual tile sizes (generous headroom, clamped). ----
    in_item = max(jnp.dtype(z.dtype).itemsize, jnp.dtype(x.dtype).itemsize)
    w_bufs = 1 if weight_kwargs else 2
    vmem_need = (2 * 2 * tb_eff * d * in_item            # z + x tiles, double-buffered
                 + w_bufs * (2 * d * tn * w_item + tn * 4)  # weights + bias
                 + 2 * tb_eff * tn * 4)                   # f32 output tile, double-buffered
    vmem_limit = int(min(56 << 20, max(32 << 20, int(vmem_need * 1.5) + (2 << 20))))

    # ---- advisory cost model: tiny, memory-bound op. ----
    cost = pl.CostEstimate(
        flops=4 * B * d * d + 2 * B * d,
        transcendentals=0,
        bytes_accessed=(B * din * jnp.dtype(z.dtype).itemsize
                        + B * dout * jnp.dtype(x.dtype).itemsize
                        + 2 * d * d * w_item + d * 4
                        + B * d * 4),
    )

    return pl.pallas_call(
        _icnn_kernel,
        out_shape=jax.ShapeDtypeStruct((B, d), jnp.float32),
        grid_spec=pltpu.PrefetchScalarGridSpec(
            num_scalar_prefetch=0,
            grid=(grid_b, grid_n),
            in_specs=[
                pl.BlockSpec((tb_eff, din), lambda i, j: (i, 0)),              # z tile
                pl.BlockSpec((tb_eff, dout), lambda i, j: (i, 0)),             # x tile
                pl.BlockSpec((dout, tn), lambda i, j: (0, j), **weight_kwargs),  # W_skip^T
                pl.BlockSpec((1, tn), lambda i, j: (0, j), **weight_kwargs),     # bias
                pl.BlockSpec((din, tn), lambda i, j: (0, j), **weight_kwargs),   # exp(logW)^T
            ],
            out_specs=pl.BlockSpec((tb_eff, tn), lambda i, j: (i, j)),
        ),
        compiler_params=pltpu.CompilerParams(
            dimension_semantics=("parallel", "parallel"),
            vmem_limit_bytes=vmem_limit,
        ),
        cost_estimate=cost,
    )(z, x, w_skip_t, b2, w_pos_t)


# ----------------------------- references -----------------------------------

def _reference_f32(z, x, w_skip, b_skip, log_weights):
    hp = jax.lax.Precision.HIGHEST
    skip = jnp.dot(x, w_skip.T, precision=hp) + b_skip
    constrained = jnp.dot(z, jnp.exp(log_weights).T, precision=hp)
    return skip + constrained


def _reference_bf16_emulated(z, x, w_skip, b_skip, log_weights):
    """Emulates the kernel's quantization: bf16 MXU operands, f32 accumulate/bias."""
    hp = jax.lax.Precision.HIGHEST
    bf = lambda a: a.astype(jnp.bfloat16).astype(jnp.float32)
    skip = jnp.dot(bf(x), bf(w_skip).T, precision=hp) + b_skip
    w_pos = bf(jnp.exp(log_weights.astype(jnp.float32)))
    constrained = jnp.dot(bf(z), w_pos.T, precision=hp)
    return skip + constrained


if __name__ == "__main__":
    # Small shapes consistent with the module: input_dim == output_dim == 32.
    B, D = 1024, 32

    key = jax.random.PRNGKey(0)
    kz, kx, kw, kb, klw = jax.random.split(key, 5)

    z = jax.random.normal(kz, (B, D), dtype=jnp.float32)
    x = jax.random.normal(kx, (B, D), dtype=jnp.float32)

    # Parameter init mimicking the PyTorch module:
    #  - skip_linear: nn.Linear(D, D) -> weight (D, D), bias (D,), bound 1/sqrt(fan_in)
    #  - constrained_linear.log_weights: (D, D), xavier-uniform
    bound = 1.0 / jnp.sqrt(jnp.float32(D))
    w_skip = jax.random.uniform(kw, (D, D), jnp.float32, -bound, bound)
    b_skip = jax.random.uniform(kb, (D,), jnp.float32, -bound, bound)
    xav = jnp.sqrt(6.0 / (D + D))
    log_weights = jax.random.uniform(klw, (D, D), jnp.float32, -xav, xav)

    out = jax.block_until_ready(input_convex_layer(z, x, w_skip, b_skip, log_weights))
    assert out.shape == (B, D) and out.dtype == jnp.float32

    # Tight check against a reference that emulates the kernel's bf16 quantization.
    ref_q = _reference_bf16_emulated(z, x, w_skip, b_skip, log_weights)
    assert jnp.allclose(out, ref_q, atol=1e-2, rtol=1e-2), "mismatch vs bf16-emulated reference"

    # Loose semantic sanity check against the pure-f32 reference.
    ref = _reference_f32(z, x, w_skip, b_skip, log_weights)
    max_err = float(jnp.max(jnp.abs(out - ref)))
    assert max_err < 0.5, f"semantic mismatch vs f32 reference (max abs err {max_err})"

    print("KERNEL_OK")
</pallas_src>

<mosaic_0001>
module attributes {stable_mosaic.version = 11 : i64} {
  func.func @_icnn_kernel(%arg0: i32, %arg1: i32, %arg2: memref<256x32xf32, #tpu.memory_space<vmem>>, %arg3: memref<256x32xf32, #tpu.memory_space<vmem>>, %arg4: memref<32x32xbf16, #tpu.memory_space<vmem>>, %arg5: memref<1x32xf32, #tpu.memory_space<vmem>>, %arg6: memref<32x32xbf16, #tpu.memory_space<vmem>>, %arg7: memref<256x32xf32, #tpu.memory_space<vmem>>) attributes {dimension_semantics = [#tpu.dimension_semantics<parallel>, #tpu.dimension_semantics<parallel>], iteration_bounds = array<i64: 4, 1>, scalar_prefetch = 0 : i64, scratch_operands = 0 : i64, tpu.core_type = #tpu.core_type<tc>, window_params = [{transform_indices = @transform_0, window_bounds = array<i64: 256, 32>}, {transform_indices = @transform_1, window_bounds = array<i64: 256, 32>}, {transform_indices = @transform_2, window_bounds = array<i64: 32, 32>}, {transform_indices = @transform_3, window_bounds = array<i64: 1, 32>}, {transform_indices = @transform_4, window_bounds = array<i64: 32, 32>}, {transform_indices = @transform_5, window_bounds = array<i64: 256, 32>}]} {
    %c0 = arith.constant 0 : index
    %c0_0 = arith.constant 0 : index
    %0 = vector.load %arg3[%c0, %c0_0] : memref<256x32xf32, #tpu.memory_space<vmem>>, vector<256x32xf32>
    %1 = arith.truncf %0 : vector<256x32xf32> to vector<256x32xbf16>
    %c0_1 = arith.constant 0 : index
    %c0_2 = arith.constant 0 : index
    %2 = vector.load %arg4[%c0_1, %c0_2] : memref<32x32xbf16, #tpu.memory_space<vmem>>, vector<32x32xbf16>
    %cst = arith.constant dense<0.000000e+00> : vector<256x32xf32>
    %3 = tpu.matmul %1, %2, %cst {dimension_numbers = #tpu.dot_dimension_numbers<[1], [0], [0], [1], [0, 0, 1, 1], [], []>} : vector<256x32xbf16>, vector<32x32xbf16>, vector<256x32xf32> -> vector<256x32xf32>
    %c0_3 = arith.constant 0 : index
    %c0_4 = arith.constant 0 : index
    %4 = vector.load %arg2[%c0_3, %c0_4] : memref<256x32xf32, #tpu.memory_space<vmem>>, vector<256x32xf32>
    %5 = arith.truncf %4 : vector<256x32xf32> to vector<256x32xbf16>
    %c0_5 = arith.constant 0 : index
    %c0_6 = arith.constant 0 : index
    %6 = vector.load %arg6[%c0_5, %c0_6] : memref<32x32xbf16, #tpu.memory_space<vmem>>, vector<32x32xbf16>
    %cst_7 = arith.constant dense<0.000000e+00> : vector<256x32xf32>
    %7 = tpu.matmul %5, %6, %cst_7 {dimension_numbers = #tpu.dot_dimension_numbers<[1], [0], [0], [1], [0, 0, 1, 1], [], []>} : vector<256x32xbf16>, vector<32x32xbf16>, vector<256x32xf32> -> vector<256x32xf32>
    %8 = arith.addf %3, %7 : vector<256x32xf32>
    %c0_8 = arith.constant 0 : index
    %c0_9 = arith.constant 0 : index
    %9 = vector.load %arg5[%c0_8, %c0_9] : memref<1x32xf32, #tpu.memory_space<vmem>>, vector<1x32xf32>
    %10 = vector.broadcast %9 : vector<1x32xf32> to vector<256x32xf32>
    %11 = arith.addf %8, %10 : vector<256x32xf32>
    %c0_10 = arith.constant 0 : index
    %c0_11 = arith.constant 0 : index
    %12 = vector.load %arg7[%c0_10, %c0_11] : memref<256x32xf32, #tpu.memory_space<vmem>>, vector<256x32xf32>
    tpu.vector_store %arg7[%c0_10, %c0_11], %11 {strides = array<i32>} : memref<256x32xf32, #tpu.memory_space<vmem>>, vector<256x32xf32>,
    return
  }
  func.func @transform_0(%arg0: i32, %arg1: i32) -> (i32, i32) {
    %c0_i32 = arith.constant 0 : i32
    %c0_i32_0 = arith.constant 0 : i32
    return %arg0, %c0_i32 : i32, i32
  }
  func.func @transform_1(%arg0: i32, %arg1: i32) -> (i32, i32) {
    %c0_i32 = arith.constant 0 : i32
    %c0_i32_0 = arith.constant 0 : i32
    return %arg0, %c0_i32 : i32, i32
  }
  func.func @transform_2(%arg0: i32, %arg1: i32) -> (i32, i32) {
    %c0_i32 = arith.constant 0 : i32
    %c0_i32_0 = arith.constant 0 : i32
    return %c0_i32, %arg1 : i32, i32
  }
  func.func @transform_3(%arg0: i32, %arg1: i32) -> (i32, i32) {
    %c0_i32 = arith.constant 0 : i32
    %c0_i32_0 = arith.constant 0 : i32
    return %c0_i32, %arg1 : i32, i32
  }
  func.func @transform_4(%arg0: i32, %arg1: i32) -> (i32, i32) {
    %c0_i32 = arith.constant 0 : i32
    %c0_i32_0 = arith.constant 0 : i32
    return %c0_i32, %arg1 : i32, i32
  }
  func.func @transform_5(%arg0: i32, %arg1: i32) -> (i32, i32) {
    %c0_i32 = arith.constant 0 : i32
    return %arg0, %arg1 : i32, i32
  }
}

</mosaic_0001>

<llo_original>
// kernel: tpu_custom_call.1
$region0: #{tpu_custom_call.1}
  #allocation0 [shape = 'u32[]', space=smem, size = 0x4, offset = 0x4, fixed_abs, tag = 'smem constant byte address 0x4 - core index']
  #allocation1 [shape = 'u32[144,128]{1,0:T(1,128)}', space=vmem, size = 0x12000, scoped, tag = 'internal scratch']
  %s0 = inlined_call_operand.vmem [shape: f32[1024,32], index: 0, kind: input, shape index: {}]
  %s1 = inlined_call_operand.vmem [shape: f32[1024,32], index: 1, kind: input, shape index: {}]
  %s2 = inlined_call_operand.vmem [shape: bf16[32,32], index: 2, kind: input, shape index: {}]
  %s3 = inlined_call_operand.vmem [shape: f32[1,32], index: 3, kind: input, shape index: {}]
  %s4 = inlined_call_operand.vmem [shape: bf16[32,32], index: 4, kind: input, shape index: {}]
  %s5 = inlined_call_operand.vmem [shape: f32[1024,32], index: 5, kind: output, shape index: {}]
  %s6 = sld [smem:[#allocation0]]
  $region53: #{tpu_custom_call.1} parent=0
    _
  %s8 = ssub.s32 1, %s6
  %s9 = scalar_select 0, %s8, %s6
  loop: start=0, step=1, limit=6
  $region2: #{tpu_custom_call.1} parent=0 // loop_pre_header
    _
  $region3: #{tpu_custom_call.1} parent=0 // loop_header
    %s11 = sphi 0, %s15
    %p12 = scmp.ge.s32.totalorder %s11, 6
    %s18 = sphi 0, %s30
    %s19 = sphi 0, %s26
    %s20 = sphi 0, %s18
    %s21 = sphi 0, %s19
    %s22 = sphi 0, %s20
    %s23 = sphi 0, %s21
    %s33 = sphi 0, %s35
    %s36 = sphi 0, %s33
    %s37 = sphi 0, %s36
    %s53 = sphi 0, %s37
    %s59 = sphi 0, %s61
    %s62 = sphi 0, %s59
    %s63 = sphi 0, %s62
    %s79 = sphi 0, %s63
    %s85 = sphi 0, %s87
    %s88 = sphi 0, %s85
    %s89 = sphi 0, %s88
    %s105 = sphi 0, %s89
    %s111 = sphi 0, %s113
    %s114 = sphi 0, %s111
    %s115 = sphi 0, %s114
    %s131 = sphi 0, %s115
    %s137 = sphi 0, %s139
    %s140 = sphi 0, %s137
    %s141 = sphi 0, %s140
    %s157 = sphi 0, %s141
    %s165 = sphi 0, %s167
    %s168 = sphi 0, %s165
    %s169 = sphi 0, %s168
    %s185 = sphi 0, %s169
  $region4: #{tpu_custom_call.1} parent=0 // loop_header_branch
    %14 = sbr.rel (%p12) target = $region8
  $region5: #{tpu_custom_call.1} parent=0 // loop_body
    %s16 = ssub.s32 %s11, 1
    %s17 = ssub.s32 %s11, 2
    %s24 = sadd.s32 1, %s19
    %p25 = scmp.ge.s32.totalorder %s24, 1
    %s26 = scalar_select %p25, 0, %s24
    %s27 = sadd.s32 1, %s18
    %s28 = scalar_select %p25, %s27, %s18
    %p29 = scmp.ge.s32.totalorder %s28, 4
    %s30 = scalar_select %p29, 0, %s28
    %s31 = ssub.s32 %s18, %s30
    %p32 = scmp.eq.s32.totalorder %s31, 0
    %s34 = sadd.s32 %s33, 1
    %s35 = scalar_select %p32, %s33, %s34
    %p38 = pneg %p32
    %p39 = scmp.eq.s32.totalorder %s11, 3
    %p40 = por %p38, %p39
    %p41 = scmp.ne.s32.totalorder %s33, %s36
    %p42 = scmp.eq.s32.totalorder %s11, 0
    %p43 = por %p41, %p42
    %p44 = scmp.ne.s32.totalorder %s33, %s36
    %p45 = scmp.eq.s32.totalorder %s16, 3
    %p46 = por %p44, %p45
    %p47 = scmp.ne.s32.totalorder %s36, %s37
    %p48 = scmp.eq.s32.totalorder %s16, 0
    %p49 = por %p47, %p48
    %p50 = scmp.ne.s32.totalorder %s36, %s37
    %p51 = scmp.eq.s32.totalorder %s17, 3
    %p52 = por %p50, %p51
    %p54 = scmp.ne.s32.totalorder %s37, %s53
    %p55 = scmp.eq.s32.totalorder %s17, 0
    %p56 = por %p54, %p55
    %s57 = ssub.s32 %s18, %s30
    %p58 = scmp.eq.s32.totalorder %s57, 0
    %s60 = sadd.s32 %s59, 1
    %s61 = scalar_select %p58, %s59, %s60
    %p64 = pneg %p58
    %p65 = scmp.eq.s32.totalorder %s11, 3
    %p66 = por %p64, %p65
    %p67 = scmp.ne.s32.totalorder %s59, %s62
    %p68 = scmp.eq.s32.totalorder %s11, 0
    %p69 = por %p67, %p68
    %p70 = scmp.ne.s32.totalorder %s59, %s62
    %p71 = scmp.eq.s32.totalorder %s16, 3
    %p72 = por %p70, %p71
    %p73 = scmp.ne.s32.totalorder %s62, %s63
    %p74 = scmp.eq.s32.totalorder %s16, 0
    %p75 = por %p73, %p74
    %p76 = scmp.ne.s32.totalorder %s62, %s63
    %p77 = scmp.eq.s32.totalorder %s17, 3
    %p78 = por %p76, %p77
    %p80 = scmp.ne.s32.totalorder %s63, %s79
    %p81 = scmp.eq.s32.totalorder %s17, 0
    %p82 = por %p80, %p81
    %s83 = ssub.s32 %s19, %s26
    %p84 = scmp.eq.s32.totalorder %s83, 0
    %s86 = sadd.s32 %s85, 1
    %s87 = scalar_select %p84, %s85, %s86
    %p90 = pneg %p84
    %p91 = scmp.eq.s32.totalorder %s11, 3
    %p92 = por %p90, %p91
    %p93 = scmp.ne.s32.totalorder %s85, %s88
    %p94 = scmp.eq.s32.totalorder %s11, 0
    %p95 = por %p93, %p94
    %p96 = scmp.ne.s32.totalorder %s85, %s88
    %p97 = scmp.eq.s32.totalorder %s16, 3
    %p98 = por %p96, %p97
    %p99 = scmp.ne.s32.totalorder %s88, %s89
    %p100 = scmp.eq.s32.totalorder %s16, 0
    %p101 = por %p99, %p100
    %p102 = scmp.ne.s32.totalorder %s88, %s89
    %p103 = scmp.eq.s32.totalorder %s17, 3
    %p104 = por %p102, %p103
    %p106 = scmp.ne.s32.totalorder %s89, %s105
    %p107 = scmp.eq.s32.totalorder %s17, 0
    %p108 = por %p106, %p107
    %s109 = ssub.s32 %s19, %s26
    %p110 = scmp.eq.s32.totalorder %s109, 0
    %s112 = sadd.s32 %s111, 1
    %s113 = scalar_select %p110, %s111, %s112
    %p116 = pneg %p110
    %p117 = scmp.eq.s32.totalorder %s11, 3
    %p118 = por %p116, %p117
    %p119 = scmp.ne.s32.totalorder %s111, %s114
    %p120 = scmp.eq.s32.totalorder %s11, 0
    %p121 = por %p119, %p120
    %p122 = scmp.ne.s32.totalorder %s111, %s114
    %p123 = scmp.eq.s32.totalorder %s16, 3
    %p124 = por %p122, %p123
    %p125 = scmp.ne.s32.totalorder %s114, %s115
    %p126 = scmp.eq.s32.totalorder %s16, 0
    %p127 = por %p125, %p126
    %p128 = scmp.ne.s32.totalorder %s114, %s115
    %p129 = scmp.eq.s32.totalorder %s17, 3
    %p130 = por %p128, %p129
    %p132 = scmp.ne.s32.totalorder %s115, %s131
    %p133 = scmp.eq.s32.totalorder %s17, 0
    %p134 = por %p132, %p133
    %s135 = ssub.s32 %s19, %s26
    %p136 = scmp.eq.s32.totalorder %s135, 0
    %s138 = sadd.s32 %s137, 1
    %s139 = scalar_select %p136, %s137, %s138
    %p142 = pneg %p136
    %p143 = scmp.eq.s32.totalorder %s11, 3
    %p144 = por %p142, %p143
    %p145 = scmp.ne.s32.totalorder %s137, %s140
    %p146 = scmp.eq.s32.totalorder %s11, 0
    %p147 = por %p145, %p146
    %p148 = scmp.ne.s32.totalorder %s137, %s140
    %p149 = scmp.eq.s32.totalorder %s16, 3
    %p150 = por %p148, %p149
    %p151 = scmp.ne.s32.totalorder %s140, %s141
    %p152 = scmp.eq.s32.totalorder %s16, 0
    %p153 = por %p151, %p152
    %p154 = scmp.ne.s32.totalorder %s140, %s141
    %p155 = scmp.eq.s32.totalorder %s17, 3
    %p156 = por %p154, %p155
    %p158 = scmp.ne.s32.totalorder %s141, %s157
    %p159 = scmp.eq.s32.totalorder %s17, 0
    %p160 = por %p158, %p159
    %s161 = ssub.s32 %s18, %s30
    %s162 = ssub.s32 %s19, %s26
    %s163 = sor.u32 %s161, %s162
    %p164 = scmp.eq.s32.totalorder %s163, 0
    %s166 = sadd.s32 %s165, 1
    %s167 = scalar_select %p164, %s165, %s166
    %p170 = pneg %p164
    %p171 = scmp.eq.s32.totalorder %s11, 3
    %p172 = por %p170, %p171
    %p173 = scmp.ne.s32.totalorder %s165, %s168
    %p174 = scmp.eq.s32.totalorder %s11, 0
    %p175 = por %p173, %p174
    %p176 = scmp.ne.s32.totalorder %s165, %s168
    %p177 = scmp.eq.s32.totalorder %s16, 3
    %p178 = por %p176, %p177
    %p179 = scmp.ne.s32.totalorder %s168, %s169
    %p180 = scmp.eq.s32.totalorder %s16, 0
    %p181 = por %p179, %p180
    %p182 = scmp.ne.s32.totalorder %s168, %s169
    %p183 = scmp.eq.s32.totalorder %s17, 3
    %p184 = por %p182, %p183
    %p186 = scmp.ne.s32.totalorder %s169, %s185
    %p187 = scmp.eq.s32.totalorder %s17, 0
    %p188 = por %p186, %p187
    %p189 = scmp.le.s32.totalorder 1, %s11
    %p190 = scmp.lt.s32.totalorder %s11, 5
    %p191 = pnand %p189, %p190
    %p192 = pneg %p191
    // Predicated region
    $region9: #{tpu_custom_call.1} parent=5 // pred_check
      _
    $region10: #{tpu_custom_call.1} parent=5 // pred_check_branch
      %194 = sbr.rel (%p191) target = $region12
    $region11: #{tpu_custom_call.1} parent=5 // pred_region
      %s195 = ssub.s32 %s11, 1
      // Predicated region
      $region13: #{tpu_custom_call.1} parent=11 // pred_check
        %p196 = pneg %p101
      $region14: #{tpu_custom_call.1} parent=11 // pred_check_branch
        %198 = sbr.rel (%p196) target = $region16
      $region15: #{tpu_custom_call.1} parent=11 // pred_region
        %p199 = scmp.lt.s32.totalorder %s21, 0
        %s200 = scalar_select %p199, %s21, 0
        %s201 = smul.addr %s200, 4
        %s202 = scalar_lea.vmem %s2, %s201
      $region16: #{tpu_custom_call.1} parent=11 // pred_fallthru
        _
      // Predicated region
      $region17: #{tpu_custom_call.1} parent=11 // pred_check
        %p203 = pneg %p127
      $region18: #{tpu_custom_call.1} parent=11 // pred_check_branch
        %205 = sbr.rel (%p203) target = $region20
      $region19: #{tpu_custom_call.1} parent=11 // pred_region
        %p206 = scmp.lt.s32.totalorder %s21, 0
        %s207 = scalar_select %p206, %s21, 0
        %s208 = scalar_lea.vmem %s3, %s207
      $region20: #{tpu_custom_call.1} parent=11 // pred_fallthru
        _
      // Predicated region
      $region21: #{tpu_custom_call.1} parent=11 // pred_check
        %p209 = pneg %p153
      $region22: #{tpu_custom_call.1} parent=11 // pred_check_branch
        %211 = sbr.rel (%p209) target = $region24
      $region23: #{tpu_custom_call.1} parent=11 // pred_region
        %p212 = scmp.lt.s32.totalorder %s21, 0
        %s213 = scalar_select %p212, %s21, 0
        %s214 = smul.addr %s213, 4
        %s215 = scalar_lea.vmem %s4, %s214
      $region24: #{tpu_custom_call.1} parent=11 // pred_fallthru
        _
    $region12: #{tpu_custom_call.1} parent=5 // pred_fallthru
      _
    %p216 = scmp.lt.s32.totalorder %s11, 4
    // Predicated region
    $region25: #{tpu_custom_call.1} parent=5 // pred_check
      %p217 = pneg %p216
    $region26: #{tpu_custom_call.1} parent=5 // pred_check_branch
      %219 = sbr.rel (%p217) target = $region28
    $region27: #{tpu_custom_call.1} parent=5 // pred_region
      // Predicated region
      $region29: #{tpu_custom_call.1} parent=27 // pred_check
        %p220 = pneg %p43
      $region30: #{tpu_custom_call.1} parent=27 // pred_check_branch
        %222 = sbr.rel (%p220) target = $region32
      $region31: #{tpu_custom_call.1} parent=27 // pred_region
        %s223 = smul.u32 32, %s18
        %p224 = scmp.lt.s32.totalorder %s223, 127
        %s225 = scalar_select %p224, %s223, 127
        %s226 = smul.addr %s225, 8
        %s227 = scalar_lea.vmem %s0, %s226
        %s228 = smul.u32 32, %s18
      $region32: #{tpu_custom_call.1} parent=27 // pred_fallthru
        _
      // Predicated region
      $region33: #{tpu_custom_call.1} parent=27 // pred_check
        %p229 = pneg %p69
      $region34: #{tpu_custom_call.1} parent=27 // pred_check_branch
        %231 = sbr.rel (%p229) target = $region36
      $region35: #{tpu_custom_call.1} parent=27 // pred_region
        %s232 = smul.u32 32, %s18
        %p233 = scmp.lt.s32.totalorder %s232, 127
        %s234 = scalar_select %p233, %s232, 127
        %s235 = smul.addr %s234, 8
        %s236 = scalar_lea.vmem %s1, %s235
        %s237 = smul.u32 32, %s18
      $region36: #{tpu_custom_call.1} parent=27 // pred_fallthru
        _
    $region28: #{tpu_custom_call.1} parent=5 // pred_fallthru
      _
    %p238 = scmp.le.s32.totalorder 1, %s11
    %p239 = scmp.lt.s32.totalorder %s11, 5
    %p240 = pnand %p238, %p239
    %p241 = pneg %p240
    // Predicated region
    $region37: #{tpu_custom_call.1} parent=5 // pred_check
      _
    $region38: #{tpu_custom_call.1} parent=5 // pred_check_branch
      %243 = sbr.rel (%p240) target = $region40
    $region39: #{tpu_custom_call.1} parent=5 // pred_region
      %s244 = ssub.s32 %s11, 1
      %s245 = smul.u32 32, %s20
      %p246 = scmp.lt.s32.totalorder %s245, 127
      %s247 = scalar_select %p246, %s245, 127
      %s248 = smul.addr %s247, 8
      %s249 = scalar_lea.vmem %s0, %s248
      %p250 = pneg %p49
      %p251 = pneg %p46
      %s252 = smul.u32 32, %s20
      %p253 = scmp.lt.s32.totalorder %s252, 127
      %s254 = scalar_select %p253, %s252, 127
      %s255 = smul.addr %s254, 8
      %s256 = scalar_lea.vmem %s1, %s255
      %p257 = pneg %p75
      %p258 = pneg %p72
      %p259 = scmp.lt.s32.totalorder %s21, 0
      %s260 = scalar_select %p259, %s21, 0
      %s261 = smul.addr %s260, 4
      %s262 = scalar_lea.vmem %s2, %s261
      %p263 = pneg %p101
      %p264 = pneg %p98
      %p265 = scmp.lt.s32.totalorder %s21, 0
      %s266 = scalar_select %p265, %s21, 0
      %s267 = scalar_lea.vmem %s3, %s266
      %p268 = pneg %p127
      %p269 = pneg %p124
      %p270 = scmp.lt.s32.totalorder %s21, 0
      %s271 = scalar_select %p270, %s21, 0
      %s272 = smul.addr %s271, 4
      %s273 = scalar_lea.vmem %s4, %s272
      %p274 = pneg %p153
      %p275 = pneg %p150
      %p276 = pneg %p181
      %p277 = pneg %p178
      %s278 = smul.u32 32, %s20
      %p279 = scmp.lt.s32.totalorder %s278, 127
      %s280 = scalar_select %p279, %s278, 127
      %p281 = scmp.lt.s32.totalorder %s21, 0
      %s282 = scalar_select %p281, %s21, 0
      %s283 = sadd.s32 %s282, %s280
      %s284 = smul.addr %s283, 8
      %s285 = scalar_lea.vmem %s5, %s284
      %s286 = smul.u32 32, %s20
      %p287 = scmp.lt.s32.totalorder %s286, 127
      %s288 = scalar_select %p287, %s286, 127
      %s289 = smul.addr %s288, 8
      %s290 = scalar_lea.vmem %s0, %s289
      %s291 = smul.u32 32, %s20
      %s292 = smul.u32 32, %s20
      %p293 = scmp.lt.s32.totalorder %s292, 127
      %s294 = scalar_select %p293, %s292, 127
      %s295 = smul.addr %s294, 8
      %s296 = scalar_lea.vmem %s1, %s295
      %s297 = smul.u32 32, %s20
      %p298 = scmp.lt.s32.totalorder %s21, 0
      %s299 = scalar_select %p298, %s21, 0
      %s300 = smul.addr %s299, 4
      %s301 = scalar_lea.vmem %s2, %s300
      %p302 = scmp.lt.s32.totalorder %s21, 0
      %s303 = scalar_select %p302, %s21, 0
      %s304 = scalar_lea.vmem %s3, %s303
      %p305 = scmp.lt.s32.totalorder %s21, 0
      %s306 = scalar_select %p305, %s21, 0
      %s307 = smul.addr %s306, 4
      %s308 = scalar_lea.vmem %s4, %s307
      %s309 = smul.u32 32, %s20
      %p310 = scmp.lt.s32.totalorder %s309, 127
      %s311 = scalar_select %p310, %s309, 127
      %p312 = scmp.lt.s32.totalorder %s21, 0
      %s313 = scalar_select %p312, %s21, 0
      %s314 = sadd.s32 %s313, %s311
      %s315 = smul.addr %s314, 8
      %s316 = scalar_lea.vmem %s5, %s315
      %s317 = smul.u32 32, %s20
      %v319 = vld [vmem:[%s296] sm:$0xff]
      %v320 = vld [vmem:[%s296 + $0x8] sm:$0xff]
      %v321 = vld [vmem:[%s296 + $0x10] sm:$0xff]
      %v322 = vld [vmem:[%s296 + $0x18] sm:$0xff]
      %v323 = vld [vmem:[%s296 + $0x20] sm:$0xff]
      %v324 = vld [vmem:[%s296 + $0x28] sm:$0xff]
      %v325 = vld [vmem:[%s296 + $0x30] sm:$0xff]
      %v326 = vld [vmem:[%s296 + $0x38] sm:$0xff]
      %v327 = vld [vmem:[%s296 + $0x40] sm:$0xff]
      %v328 = vld [vmem:[%s296 + $0x48] sm:$0xff]
      %v329 = vld [vmem:[%s296 + $0x50] sm:$0xff]
      %v330 = vld [vmem:[%s296 + $0x58] sm:$0xff]
      %v331 = vld [vmem:[%s296 + $0x60] sm:$0xff]
      %v332 = vld [vmem:[%s296 + $0x68] sm:$0xff]
      %v333 = vld [vmem:[%s296 + $0x70] sm:$0xff]
      %v334 = vld [vmem:[%s296 + $0x78] sm:$0xff]
      %v335 = vld [vmem:[%s296 + $0x80] sm:$0xff]
      %v336 = vld [vmem:[%s296 + $0x88] sm:$0xff]
      %v337 = vld [vmem:[%s296 + $0x90] sm:$0xff]
      %v338 = vld [vmem:[%s296 + $0x98] sm:$0xff]
      %v339 = vld [vmem:[%s296 + $0xa0] sm:$0xff]
      %v340 = vld [vmem:[%s296 + $0xa8] sm:$0xff]
      %v341 = vld [vmem:[%s296 + $0xb0] sm:$0xff]
      %v342 = vld [vmem:[%s296 + $0xb8] sm:$0xff]
      %v343 = vld [vmem:[%s296 + $0xc0] sm:$0xff]
      %v344 = vld [vmem:[%s296 + $0xc8] sm:$0xff]
      %v345 = vld [vmem:[%s296 + $0xd0] sm:$0xff]
      %v346 = vld [vmem:[%s296 + $0xd8] sm:$0xff]
      %v347 = vld [vmem:[%s296 + $0xe0] sm:$0xff]
      %v348 = vld [vmem:[%s296 + $0xe8] sm:$0xff]
      %v349 = vld [vmem:[%s296 + $0xf0] sm:$0xff]
      %v350 = vld [vmem:[%s296 + $0xf8] sm:$0xff]
      %v351 = vpack.c.bf16 %v320, %v319
      %v352 = vpack.c.bf16 %v322, %v321
      %v353 = vpack.c.bf16 %v324, %v323
      %v354 = vpack.c.bf16 %v326, %v325
      %v355 = vpack.c.bf16 %v328, %v327
      %v356 = vpack.c.bf16 %v330, %v329
      %v357 = vpack.c.bf16 %v332, %v331
      %v358 = vpack.c.bf16 %v334, %v333
      %v359 = vpack.c.bf16 %v336, %v335
      %v360 = vpack.c.bf16 %v338, %v337
      %v361 = vpack.c.bf16 %v340, %v339
      %v362 = vpack.c.bf16 %v342, %v341
      %v363 = vpack.c.bf16 %v344, %v343
      %v364 = vpack.c.bf16 %v346, %v345
      %v365 = vpack.c.bf16 %v348, %v347
      %v366 = vpack.c.bf16 %v350, %v349
      %v367 = vld [vmem:[%s301] sm:$0xf]
      %v368 = vld [vmem:[%s301 + $0x4] sm:$0xf]
      %v369 = vld [vmem:[%s301 + $0x8] sm:$0xf]
      %v370 = vld [vmem:[%s301 + $0xc] sm:$0xf]
      %v371 = vld [vmem:[%s290] sm:$0xff]
      %v372 = vld [vmem:[%s290 + $0x8] sm:$0xff]
      %v373 = vld [vmem:[%s290 + $0x10] sm:$0xff]
      %v374 = vld [vmem:[%s290 + $0x18] sm:$0xff]
      %v375 = vld [vmem:[%s290 + $0x20] sm:$0xff]
      %v376 = vld [vmem:[%s290 + $0x28] sm:$0xff]
      %v377 = vld [vmem:[%s290 + $0x30] sm:$0xff]
      %v378 = vld [vmem:[%s290 + $0x38] sm:$0xff]
      %v379 = vld [vmem:[%s290 + $0x40] sm:$0xff]
      %v380 = vld [vmem:[%s290 + $0x48] sm:$0xff]
      %v381 = vld [vmem:[%s290 + $0x50] sm:$0xff]
      %v382 = vld [vmem:[%s290 + $0x58] sm:$0xff]
      %v383 = vld [vmem:[%s290 + $0x60] sm:$0xff]
      %v384 = vld [vmem:[%s290 + $0x68] sm:$0xff]
      %v385 = vld [vmem:[%s290 + $0x70] sm:$0xff]
      %v386 = vld [vmem:[%s290 + $0x78] sm:$0xff]
      %v387 = vld [vmem:[%s290 + $0x80] sm:$0xff]
      %v388 = vld [vmem:[%s290 + $0x88] sm:$0xff]
      %v389 = vld [vmem:[%s290 + $0x90] sm:$0xff]
      %v390 = vld [vmem:[%s290 + $0x98] sm:$0xff]
      %v391 = vld [vmem:[%s290 + $0xa0] sm:$0xff]
      %v392 = vld [vmem:[%s290 + $0xa8] sm:$0xff]
      %v393 = vld [vmem:[%s290 + $0xb0] sm:$0xff]
      %v394 = vld [vmem:[%s290 + $0xb8] sm:$0xff]
      %v395 = vld [vmem:[%s290 + $0xc0] sm:$0xff]
      %v396 = vld [vmem:[%s290 + $0xc8] sm:$0xff]
      %v397 = vld [vmem:[%s290 + $0xd0] sm:$0xff]
      %v398 = vld [vmem:[%s290 + $0xd8] sm:$0xff]
      %v399 = vld [vmem:[%s290 + $0xe0] sm:$0xff]
      %v400 = vld [vmem:[%s290 + $0xe8] sm:$0xff]
      %v401 = vld [vmem:[%s290 + $0xf0] sm:$0xff]
      %v402 = vld [vmem:[%s290 + $0xf8] sm:$0xff]
      %v403 = vpack.c.bf16 %v372, %v371
      %v404 = vpack.c.bf16 %v374, %v373
      %v405 = vpack.c.bf16 %v376, %v375
      %v406 = vpack.c.bf16 %v378, %v377
      %v407 = vpack.c.bf16 %v380, %v379
      %v408 = vpack.c.bf16 %v382, %v381
      %v409 = vpack.c.bf16 %v384, %v383
      %v410 = vpack.c.bf16 %v386, %v385
      %v411 = vpack.c.bf16 %v388, %v387
      %v412 = vpack.c.bf16 %v390, %v389
      %v413 = vpack.c.bf16 %v392, %v391
      %v414 = vpack.c.bf16 %v394, %v393
      %v415 = vpack.c.bf16 %v396, %v395
      %v416 = vpack.c.bf16 %v398, %v397
      %v417 = vpack.c.bf16 %v400, %v399
      %v418 = vpack.c.bf16 %v402, %v401
      %v419 = vld [vmem:[%s308] sm:$0xf]
      %v420 = vld [vmem:[%s308 + $0x4] sm:$0xf]
      %v421 = vld [vmem:[%s308 + $0x8] sm:$0xf]
      %v422 = vld [vmem:[%s308 + $0xc] sm:$0xf]
      %v427 = vunpack.c.l.b16 %v419
      %v428 = vunpack.c.l.b16 %v420
      %v429 = vunpack.c.l.b16 %v421
      %v430 = vunpack.c.l.b16 %v422
      %v431 = vpack.c.b16 %v428, %v427
      %v432 = vpack.c.b16 %v430, %v429
      %vm435 = vcmask 261120
      %v437 = vsel %vm435, %v403, 0
      %v440 = vsel %vm435, %v404, 0
      %v443 = vsel %vm435, %v405, 0
      %v446 = vsel %vm435, %v406, 0
      %v449 = vsel %vm435, %v407, 0
      %v452 = vsel %vm435, %v408, 0
      %v455 = vsel %vm435, %v409, 0
      %v458 = vsel %vm435, %v410, 0
      %v461 = vsel %vm435, %v411, 0
      %v464 = vsel %vm435, %v412, 0
      %v467 = vsel %vm435, %v413, 0
      %v470 = vsel %vm435, %v414, 0
      %v473 = vsel %vm435, %v415, 0
      %v476 = vsel %vm435, %v416, 0
      %v479 = vsel %vm435, %v417, 0
      %v482 = vsel %vm435, %v418, 0
      %484 = vmatprep.subr.bf16.mxu0 0
      %485 = vmatpush1.bf16.msra.mxu0 0
      %486 = vmatprep.subr.bf16.mxu0 0
      %487 = vmatpush1.bf16.msra.mxu0 0
      %488 = vmatprep.subr.bf16.mxu0 0
      %489 = vmatpush1.bf16.msra.mxu0 0
      %490 = vmatprep.subr.bf16.mxu0 0
      %491 = vmatpush1.bf16.msra.mxu0 0
      %492 = vmatprep.subr.bf16.mxu0 0
      %493 = vmatpush1.bf16.msra.mxu0 0
      %494 = vmatprep.subr.bf16.mxu0 0
      %495 = vmatpush1.bf16.msra.mxu0 0
      %496 = vmatprep.subr.bf16.mxu0 0
      %497 = vmatpush1.bf16.msra.mxu0 %v432
      %498 = vmatprep.subr.bf16.mxu0 0
      %499 = vmatpush1.bf16.msra.mxu0 %v431
      %500 = vmatprep.subr.bf16.mxu0 0
      %501 = vmatpush2.bf16.msra.mxu0 0
      %502 = vmatprep.subr.bf16.mxu0 0
      %503 = vmatpush2.bf16.msra.mxu0 0
      %504 = vmatprep.subr.bf16.mxu0 0
      %505 = vmatpush2.bf16.msra.mxu0 0
      %506 = vmatprep.subr.bf16.mxu0 0
      %507 = vmatpush2.bf16.msra.mxu0 0
      %508 = vmatprep.subr.bf16.mxu0 0
      %509 = vmatpush2.bf16.msra.mxu0 0
      %510 = vmatprep.subr.bf16.mxu0 0
      %511 = vmatpush2.bf16.msra.mxu0 0
      %512 = vmatprep.subr.bf16.mxu0 0
      %513 = vmatpush2.bf16.msra.mxu0 0
      %514 = vmatprep.subr.bf16.mxu0 0
      %515 = vmatpush2.bf16.msra.mxu0 0
      %516 = vmatprep.mubr.bf16.mxu0 0
      %517 = vmatmul.mubr.bf16.gmra.mxu0 %v437
      %v518 = vpop.f32.mrf.mxu0
      %v519 = vadd.f32 0.0, %v518
      %v520 = vpop.f32.mrf.mxu0
      %v521 = vpop.f32.mrf.mxu0
      %v522 = vadd.f32 0.0, %v521
      %v523 = vpop.f32.mrf.mxu0
      %524 = vmatprep.mubr.bf16.mxu0 0
      %525 = vmatmul.mubr.bf16.gmra.mxu0 %v440
      %v526 = vpop.f32.mrf.mxu0
      %v527 = vadd.f32 0.0, %v526
      %v528 = vpop.f32.mrf.mxu0
      %v529 = vpop.f32.mrf.mxu0
      %v530 = vadd.f32 0.0, %v529
      %v531 = vpop.f32.mrf.mxu0
      %532 = vmatprep.mubr.bf16.mxu0 0
      %533 = vmatmul.mubr.bf16.gmra.mxu0 %v443
      %v534 = vpop.f32.mrf.mxu0
      %v535 = vadd.f32 0.0, %v534
      %v536 = vpop.f32.mrf.mxu0
      %v537 = vpop.f32.mrf.mxu0
      %v538 = vadd.f32 0.0, %v537
      %v539 = vpop.f32.mrf.mxu0
      %540 = vmatprep.mubr.bf16.mxu0 0
      %541 = vmatmul.mubr.bf16.gmra.mxu0 %v446
      %v542 = vpop.f32.mrf.mxu0
      %v543 = vadd.f32 0.0, %v542
      %v544 = vpop.f32.mrf.mxu0
      %v545 = vpop.f32.mrf.mxu0
      %v546 = vadd.f32 0.0, %v545
      %v547 = vpop.f32.mrf.mxu0
      %548 = vmatprep.mubr.bf16.mxu0 0
      %549 = vmatmul.mubr.bf16.gmra.mxu0 %v449
      %v550 = vpop.f32.mrf.mxu0
      %v551 = vadd.f32 0.0, %v550
      %v552 = vpop.f32.mrf.mxu0
      %v553 = vpop.f32.mrf.mxu0
      %v554 = vadd.f32 0.0, %v553
      %v555 = vpop.f32.mrf.mxu0
      %556 = vmatprep.mubr.bf16.mxu0 0
      %557 = vmatmul.mubr.bf16.gmra.mxu0 %v452
      %v558 = vpop.f32.mrf.mxu0
      %v559 = vadd.f32 0.0, %v558
      %v560 = vpop.f32.mrf.mxu0
      %v561 = vpop.f32.mrf.mxu0
      %v562 = vadd.f32 0.0, %v561
      %v563 = vpop.f32.mrf.mxu0
      %564 = vmatprep.mubr.bf16.mxu0 0
      %565 = vmatmul.mubr.bf16.gmra.mxu0 %v455
      %v566 = vpop.f32.mrf.mxu0
      %v567 = vadd.f32 0.0, %v566
      %v568 = vpop.f32.mrf.mxu0
      %v569 = vpop.f32.mrf.mxu0
      %v570 = vadd.f32 0.0, %v569
      %v571 = vpop.f32.mrf.mxu0
      %572 = vmatprep.mubr.bf16.mxu0 0
      %573 = vmatmul.mubr.bf16.gmra.mxu0 %v458
      %v574 = vpop.f32.mrf.mxu0
      %v575 = vadd.f32 0.0, %v574
      %v576 = vpop.f32.mrf.mxu0
      %v577 = vpop.f32.mrf.mxu0
      %v578 = vadd.f32 0.0, %v577
      %v579 = vpop.f32.mrf.mxu0
      %580 = vmatprep.mubr.bf16.mxu0 0
      %581 = vmatmul.mubr.bf16.gmra.mxu0 %v461
      %v582 = vpop.f32.mrf.mxu0
      %v583 = vadd.f32 0.0, %v582
      %v584 = vpop.f32.mrf.mxu0
      %v585 = vpop.f32.mrf.mxu0
      %v586 = vadd.f32 0.0, %v585
      %v587 = vpop.f32.mrf.mxu0
      %588 = vmatprep.mubr.bf16.mxu0 0
      %589 = vmatmul.mubr.bf16.gmra.mxu0 %v464
      %v590 = vpop.f32.mrf.mxu0
      %v591 = vadd.f32 0.0, %v590
      %v592 = vpop.f32.mrf.mxu0
      %v593 = vpop.f32.mrf.mxu0
      %v594 = vadd.f32 0.0, %v593
      %v595 = vpop.f32.mrf.mxu0
      %596 = vmatprep.mubr.bf16.mxu0 0
      %597 = vmatmul.mubr.bf16.gmra.mxu0 %v467
      %v598 = vpop.f32.mrf.mxu0
      %v599 = vadd.f32 0.0, %v598
      %v600 = vpop.f32.mrf.mxu0
      %v601 = vpop.f32.mrf.mxu0
      %v602 = vadd.f32 0.0, %v601
      %v603 = vpop.f32.mrf.mxu0
      %604 = vmatprep.mubr.bf16.mxu0 0
      %605 = vmatmul.mubr.bf16.gmra.mxu0 %v470
      %v606 = vpop.f32.mrf.mxu0
      %v607 = vadd.f32 0.0, %v606
      %v608 = vpop.f32.mrf.mxu0
      %v609 = vpop.f32.mrf.mxu0
      %v610 = vadd.f32 0.0, %v609
      %v611 = vpop.f32.mrf.mxu0
      %612 = vmatprep.mubr.bf16.mxu0 0
      %613 = vmatmul.mubr.bf16.gmra.mxu0 %v473
      %v614 = vpop.f32.mrf.mxu0
      %v615 = vadd.f32 0.0, %v614
      %v616 = vpop.f32.mrf.mxu0
      %v617 = vpop.f32.mrf.mxu0
      %v618 = vadd.f32 0.0, %v617
      %v619 = vpop.f32.mrf.mxu0
      %620 = vmatprep.mubr.bf16.mxu0 0
      %621 = vmatmul.mubr.bf16.gmra.mxu0 %v476
      %v622 = vpop.f32.mrf.mxu0
      %v623 = vadd.f32 0.0, %v622
      %v624 = vpop.f32.mrf.mxu0
      %v625 = vpop.f32.mrf.mxu0
      %v626 = vadd.f32 0.0, %v625
      %v627 = vpop.f32.mrf.mxu0
      %628 = vmatprep.mubr.bf16.mxu0 0
      %629 = vmatmul.mubr.bf16.gmra.mxu0 %v479
      %v630 = vpop.f32.mrf.mxu0
      %v631 = vadd.f32 0.0, %v630
      %v632 = vpop.f32.mrf.mxu0
      %v633 = vpop.f32.mrf.mxu0
      %v634 = vadd.f32 0.0, %v633
      %v635 = vpop.f32.mrf.mxu0
      %636 = vmatprep.mubr.bf16.mxu0 0
      %637 = vmatmul.mubr.bf16.gmra.mxu0 %v482
      %v638 = vpop.f32.mrf.mxu0
      %v639 = vadd.f32 0.0, %v638
      %v640 = vpop.f32.mrf.mxu0
      %v641 = vpop.f32.mrf.mxu0
      %v642 = vadd.f32 0.0, %v641
      %v643 = vpop.f32.mrf.mxu0
      %644 = vdwg.mxu0
      %v649 = vunpack.c.l.b16 %v367
      %v650 = vunpack.c.l.b16 %v368
      %v651 = vunpack.c.l.b16 %v369
      %v652 = vunpack.c.l.b16 %v370
      %v653 = vpack.c.b16 %v650, %v649
      %v654 = vpack.c.b16 %v652, %v651
      %v658 = vsel %vm435, %v351, 0
      %v661 = vsel %vm435, %v352, 0
      %v664 = vsel %vm435, %v353, 0
      %v667 = vsel %vm435, %v354, 0
      %v670 = vsel %vm435, %v355, 0
      %v673 = vsel %vm435, %v356, 0
      %v676 = vsel %vm435, %v357, 0
      %v679 = vsel %vm435, %v358, 0
      %v682 = vsel %vm435, %v359, 0
      %v685 = vsel %vm435, %v360, 0
      %v688 = vsel %vm435, %v361, 0
      %v691 = vsel %vm435, %v362, 0
      %v694 = vsel %vm435, %v363, 0
      %v697 = vsel %vm435, %v364, 0
      %v700 = vsel %vm435, %v365, 0
      %v703 = vsel %vm435, %v366, 0
      %705 = vmatprep.subr.bf16.mxu0 0
      %706 = vmatpush1.bf16.msra.mxu0 0
      %707 = vmatprep.subr.bf16.mxu0 0
      %708 = vmatpush1.bf16.msra.mxu0 0
      %709 = vmatprep.subr.bf16.mxu0 0
      %710 = vmatpush1.bf16.msra.mxu0 0
      %711 = vmatprep.subr.bf16.mxu0 0
      %712 = vmatpush1.bf16.msra.mxu0 0
      %713 = vmatprep.subr.bf16.mxu0 0
      %714 = vmatpush1.bf16.msra.mxu0 0
      %715 = vmatprep.subr.bf16.mxu0 0
      %716 = vmatpush1.bf16.msra.mxu0 0
      %717 = vmatprep.subr.bf16.mxu0 0
      %718 = vmatpush1.bf16.msra.mxu0 %v654
      %719 = vmatprep.subr.bf16.mxu0 0
      %720 = vmatpush1.bf16.msra.mxu0 %v653
      %721 = vmatprep.subr.bf16.mxu0 0
      %722 = vmatpush2.bf16.msra.mxu0 0
      %723 = vmatprep.subr.bf16.mxu0 0
      %724 = vmatpush2.bf16.msra.mxu0 0
      %725 = vmatprep.subr.bf16.mxu0 0
      %726 = vmatpush2.bf16.msra.mxu0 0
      %727 = vmatprep.subr.bf16.mxu0 0
      %728 = vmatpush2.bf16.msra.mxu0 0
      %729 = vmatprep.subr.bf16.mxu0 0
      %730 = vmatpush2.bf16.msra.mxu0 0
      %731 = vmatprep.subr.bf16.mxu0 0
      %732 = vmatpush2.bf16.msra.mxu0 0
      %733 = vmatprep.subr.bf16.mxu0 0
      %734 = vmatpush2.bf16.msra.mxu0 0
      %735 = vmatprep.subr.bf16.mxu0 0
      %736 = vmatpush2.bf16.msra.mxu0 0
      %737 = vmatprep.mubr.bf16.mxu0 0
      %738 = vmatmul.mubr.bf16.gmra.mxu0 %v658
      %v739 = vpop.f32.mrf.mxu0
      %v740 = vadd.f32 %v519, %v739
      %v741 = vpop.f32.mrf.mxu0
      %v742 = vpop.f32.mrf.mxu0
      %v743 = vadd.f32 %v522, %v742
      %v744 = vpop.f32.mrf.mxu0
      %745 = vmatprep.mubr.bf16.mxu0 0
      %746 = vmatmul.mubr.bf16.gmra.mxu0 %v661
      %v747 = vpop.f32.mrf.mxu0
      %v748 = vadd.f32 %v527, %v747
      %v749 = vpop.f32.mrf.mxu0
      %v750 = vpop.f32.mrf.mxu0
      %v751 = vadd.f32 %v530, %v750
      %v752 = vpop.f32.mrf.mxu0
      %753 = vmatprep.mubr.bf16.mxu0 0
      %754 = vmatmul.mubr.bf16.gmra.mxu0 %v664
      %v755 = vpop.f32.mrf.mxu0
      %v756 = vadd.f32 %v535, %v755
      %v757 = vpop.f32.mrf.mxu0
      %v758 = vpop.f32.mrf.mxu0
      %v759 = vadd.f32 %v538, %v758
      %v760 = vpop.f32.mrf.mxu0
      %761 = vmatprep.mubr.bf16.mxu0 0
      %762 = vmatmul.mubr.bf16.gmra.mxu0 %v667
      %v763 = vpop.f32.mrf.mxu0
      %v764 = vadd.f32 %v543, %v763
      %v765 = vpop.f32.mrf.mxu0
      %v766 = vpop.f32.mrf.mxu0
      %v767 = vadd.f32 %v546, %v766
      %v768 = vpop.f32.mrf.mxu0
      %769 = vmatprep.mubr.bf16.mxu0 0
      %770 = vmatmul.mubr.bf16.gmra.mxu0 %v670
      %v771 = vpop.f32.mrf.mxu0
      %v772 = vadd.f32 %v551, %v771
      %v773 = vpop.f32.mrf.mxu0
      %v774 = vpop.f32.mrf.mxu0
      %v775 = vadd.f32 %v554, %v774
      %v776 = vpop.f32.mrf.mxu0
      %777 = vmatprep.mubr.bf16.mxu0 0
      %778 = vmatmul.mubr.bf16.gmra.mxu0 %v673
      %v779 = vpop.f32.mrf.mxu0
      %v780 = vadd.f32 %v559, %v779
      %v781 = vpop.f32.mrf.mxu0
      %v782 = vpop.f32.mrf.mxu0
      %v783 = vadd.f32 %v562, %v782
      %v784 = vpop.f32.mrf.mxu0
      %785 = vmatprep.mubr.bf16.mxu0 0
      %786 = vmatmul.mubr.bf16.gmra.mxu0 %v676
      %v787 = vpop.f32.mrf.mxu0
      %v788 = vadd.f32 %v567, %v787
      %v789 = vpop.f32.mrf.mxu0
      %v790 = vpop.f32.mrf.mxu0
      %v791 = vadd.f32 %v570, %v790
      %v792 = vpop.f32.mrf.mxu0
      %793 = vmatprep.mubr.bf16.mxu0 0
      %794 = vmatmul.mubr.bf16.gmra.mxu0 %v679
      %v795 = vpop.f32.mrf.mxu0
      %v796 = vadd.f32 %v575, %v795
      %v797 = vpop.f32.mrf.mxu0
      %v798 = vpop.f32.mrf.mxu0
      %v799 = vadd.f32 %v578, %v798
      %v800 = vpop.f32.mrf.mxu0
      %801 = vmatprep.mubr.bf16.mxu0 0
      %802 = vmatmul.mubr.bf16.gmra.mxu0 %v682
      %v803 = vpop.f32.mrf.mxu0
      %v804 = vadd.f32 %v583, %v803
      %v805 = vpop.f32.mrf.mxu0
      %v806 = vpop.f32.mrf.mxu0
      %v807 = vadd.f32 %v586, %v806
      %v808 = vpop.f32.mrf.mxu0
      %809 = vmatprep.mubr.bf16.mxu0 0
      %810 = vmatmul.mubr.bf16.gmra.mxu0 %v685
      %v811 = vpop.f32.mrf.mxu0
      %v812 = vadd.f32 %v591, %v811
      %v813 = vpop.f32.mrf.mxu0
      %v814 = vpop.f32.mrf.mxu0
      %v815 = vadd.f32 %v594, %v814
      %v816 = vpop.f32.mrf.mxu0
      %817 = vmatprep.mubr.bf16.mxu0 0
      %818 = vmatmul.mubr.bf16.gmra.mxu0 %v688
      %v819 = vpop.f32.mrf.mxu0
      %v820 = vadd.f32 %v599, %v819
      %v821 = vpop.f32.mrf.mxu0
      %v822 = vpop.f32.mrf.mxu0
      %v823 = vadd.f32 %v602, %v822
      %v824 = vpop.f32.mrf.mxu0
      %825 = vmatprep.mubr.bf16.mxu0 0
      %826 = vmatmul.mubr.bf16.gmra.mxu0 %v691
      %v827 = vpop.f32.mrf.mxu0
      %v828 = vadd.f32 %v607, %v827
      %v829 = vpop.f32.mrf.mxu0
      %v830 = vpop.f32.mrf.mxu0
      %v831 = vadd.f32 %v610, %v830
      %v832 = vpop.f32.mrf.mxu0
      %833 = vmatprep.mubr.bf16.mxu0 0
      %834 = vmatmul.mubr.bf16.gmra.mxu0 %v694
      %v835 = vpop.f32.mrf.mxu0
      %v836 = vadd.f32 %v615, %v835
      %v837 = vpop.f32.mrf.mxu0
      %v838 = vpop.f32.mrf.mxu0
      %v839 = vadd.f32 %v618, %v838
      %v840 = vpop.f32.mrf.mxu0
      %841 = vmatprep.mubr.bf16.mxu0 0
      %842 = vmatmul.mubr.bf16.gmra.mxu0 %v697
      %v843 = vpop.f32.mrf.mxu0
      %v844 = vadd.f32 %v623, %v843
      %v845 = vpop.f32.mrf.mxu0
      %v846 = vpop.f32.mrf.mxu0
      %v847 = vadd.f32 %v626, %v846
      %v848 = vpop.f32.mrf.mxu0
      %849 = vmatprep.mubr.bf16.mxu0 0
      %850 = vmatmul.mubr.bf16.gmra.mxu0 %v700
      %v851 = vpop.f32.mrf.mxu0
      %v852 = vadd.f32 %v631, %v851
      %v853 = vpop.f32.mrf.mxu0
      %v854 = vpop.f32.mrf.mxu0
      %v855 = vadd.f32 %v634, %v854
      %v856 = vpop.f32.mrf.mxu0
      %857 = vmatprep.mubr.bf16.mxu0 0
      %858 = vmatmul.mubr.bf16.gmra.mxu0 %v703
      %v859 = vpop.f32.mrf.mxu0
      %v860 = vadd.f32 %v639, %v859
      %v861 = vpop.f32.mrf.mxu0
      %v862 = vpop.f32.mrf.mxu0
      %v863 = vadd.f32 %v642, %v862
      %v864 = vpop.f32.mrf.mxu0
      %865 = vdwg.mxu0
      %v866 = vld [vmem:[%s304] sm:$0x1]
      %v868 = vlaneseq
      %v869 = vshrl.u32 %v868, 7
      %v870 = vsub.s32 0, %v869
      %v871 = vrot.slane %v866, %v870
      %v873 = vadd.f32 %v740, %v871
      %v874 = vadd.f32 %v743, %v871
      %v875 = vadd.f32 %v748, %v871
      %v876 = vadd.f32 %v751, %v871
      %v877 = vadd.f32 %v756, %v871
      %v878 = vadd.f32 %v759, %v871
      %v879 = vadd.f32 %v764, %v871
      %v880 = vadd.f32 %v767, %v871
      %v881 = vadd.f32 %v772, %v871
      %v882 = vadd.f32 %v775, %v871
      %v883 = vadd.f32 %v780, %v871
      %v884 = vadd.f32 %v783, %v871
      %v885 = vadd.f32 %v788, %v871
      %v886 = vadd.f32 %v791, %v871
      %v887 = vadd.f32 %v796, %v871
      %v888 = vadd.f32 %v799, %v871
      %v889 = vadd.f32 %v804, %v871
      %v890 = vadd.f32 %v807, %v871
      %v891 = vadd.f32 %v812, %v871
      %v892 = vadd.f32 %v815, %v871
      %v893 = vadd.f32 %v820, %v871
      %v894 = vadd.f32 %v823, %v871
      %v895 = vadd.f32 %v828, %v871
      %v896 = vadd.f32 %v831, %v871
      %v897 = vadd.f32 %v836, %v871
      %v898 = vadd.f32 %v839, %v871
      %v899 = vadd.f32 %v844, %v871
      %v900 = vadd.f32 %v847, %v871
      %v901 = vadd.f32 %v852, %v871
      %v902 = vadd.f32 %v855, %v871
      %v903 = vadd.f32 %v860, %v871
      %v904 = vadd.f32 %v863, %v871
      %905 = vst.msk [vmem:[%s316] sm:$0xff] %vm435, %v873
      %906 = vst.msk [vmem:[%s316 + $0x8] sm:$0xff] %vm435, %v874
      %907 = vst.msk [vmem:[%s316 + $0x10] sm:$0xff] %vm435, %v875
      %908 = vst.msk [vmem:[%s316 + $0x18] sm:$0xff] %vm435, %v876
      %909 = vst.msk [vmem:[%s316 + $0x20] sm:$0xff] %vm435, %v877
      %910 = vst.msk [vmem:[%s316 + $0x28] sm:$0xff] %vm435, %v878
      %911 = vst.msk [vmem:[%s316 + $0x30] sm:$0xff] %vm435, %v879
      %912 = vst.msk [vmem:[%s316 + $0x38] sm:$0xff] %vm435, %v880
      %913 = vst.msk [vmem:[%s316 + $0x40] sm:$0xff] %vm435, %v881
      %914 = vst.msk [vmem:[%s316 + $0x48] sm:$0xff] %vm435, %v882
      %915 = vst.msk [vmem:[%s316 + $0x50] sm:$0xff] %vm435, %v883
      %916 = vst.msk [vmem:[%s316 + $0x58] sm:$0xff] %vm435, %v884
      %917 = vst.msk [vmem:[%s316 + $0x60] sm:$0xff] %vm435, %v885
      %918 = vst.msk [vmem:[%s316 + $0x68] sm:$0xff] %vm435, %v886
      %919 = vst.msk [vmem:[%s316 + $0x70] sm:$0xff] %vm435, %v887
      %920 = vst.msk [vmem:[%s316 + $0x78] sm:$0xff] %vm435, %v888
      %921 = vst.msk [vmem:[%s316 + $0x80] sm:$0xff] %vm435, %v889
      %922 = vst.msk [vmem:[%s316 + $0x88] sm:$0xff] %vm435, %v890
      %923 = vst.msk [vmem:[%s316 + $0x90] sm:$0xff] %vm435, %v891
      %924 = vst.msk [vmem:[%s316 + $0x98] sm:$0xff] %vm435, %v892
      %925 = vst.msk [vmem:[%s316 + $0xa0] sm:$0xff] %vm435, %v893
      %926 = vst.msk [vmem:[%s316 + $0xa8] sm:$0xff] %vm435, %v894
      %927 = vst.msk [vmem:[%s316 + $0xb0] sm:$0xff] %vm435, %v895
      %928 = vst.msk [vmem:[%s316 + $0xb8] sm:$0xff] %vm435, %v896
      %929 = vst.msk [vmem:[%s316 + $0xc0] sm:$0xff] %vm435, %v897
      %930 = vst.msk [vmem:[%s316 + $0xc8] sm:$0xff] %vm435, %v898
      %931 = vst.msk [vmem:[%s316 + $0xd0] sm:$0xff] %vm435, %v899
      %932 = vst.msk [vmem:[%s316 + $0xd8] sm:$0xff] %vm435, %v900
      %933 = vst.msk [vmem:[%s316 + $0xe0] sm:$0xff] %vm435, %v901
      %934 = vst.msk [vmem:[%s316 + $0xe8] sm:$0xff] %vm435, %v902
      %935 = vst.msk [vmem:[%s316 + $0xf0] sm:$0xff] %vm435, %v903
      %936 = vst.msk [vmem:[%s316 + $0xf8] sm:$0xff] %vm435, %v904
      %s937 = smul.u32 32, %s20
      %p938 = scmp.lt.s32.totalorder %s937, 127
      %s939 = scalar_select %p938, %s937, 127
      %p940 = scmp.lt.s32.totalorder %s21, 0
      %s941 = scalar_select %p940, %s21, 0
      %s942 = sadd.s32 %s941, %s939
      %s943 = smul.addr %s942, 8
      %s944 = scalar_lea.vmem %s5, %s943
      // Predicated region
      $region41: #{tpu_custom_call.1} parent=39 // pred_check
        %p945 = pneg %p178
      $region42: #{tpu_custom_call.1} parent=39 // pred_check_branch
        %947 = sbr.rel (%p945) target = $region44
      $region43: #{tpu_custom_call.1} parent=39 // pred_region
        %s948 = smul.u32 32, %s20
      $region44: #{tpu_custom_call.1} parent=39 // pred_fallthru
        _
    $region40: #{tpu_custom_call.1} parent=5 // pred_fallthru
      _
    %p949 = scmp.le.s32.totalorder 2, %s11
    // Predicated region
    $region45: #{tpu_custom_call.1} parent=5 // pred_check
      %p950 = pneg %p949
    $region46: #{tpu_custom_call.1} parent=5 // pred_check_branch
      %952 = sbr.rel (%p950) target = $region48
    $region47: #{tpu_custom_call.1} parent=5 // pred_region
      %s953 = ssub.s32 %s11, 2
      // Predicated region
      $region49: #{tpu_custom_call.1} parent=47 // pred_check
        %p954 = pneg %p184
      $region50: #{tpu_custom_call.1} parent=47 // pred_check_branch
        %956 = sbr.rel (%p954) target = $region52
      $region51: #{tpu_custom_call.1} parent=47 // pred_region
        %s957 = smul.u32 32, %s22
        %p958 = scmp.lt.s32.totalorder %s957, 127
        %s959 = scalar_select %p958, %s957, 127
        %p960 = scmp.lt.s32.totalorder %s23, 0
        %s961 = scalar_select %p960, %s23, 0
        %s962 = sadd.s32 %s961, %s959
        %s963 = smul.addr %s962, 8
        %s964 = scalar_lea.vmem %s5, %s963
      $region52: #{tpu_custom_call.1} parent=47 // pred_fallthru
        _
    $region48: #{tpu_custom_call.1} parent=5 // pred_fallthru
      _
  $region6: #{tpu_custom_call.1} parent=0 // loop_footer
    %s15 = sadd.s32 1, %s11
  $region7: #{tpu_custom_call.1} parent=0 // loop_footer_branch
    %10 = sbr.rel target = $region3
  $region8: #{tpu_custom_call.1} parent=0 // loop_exit
    _

</llo_original>
